<compile_context>
chip_gen: v5e
topology: v5e:2x2
jax: 0.10.0
libtpu: 0.0.40
codegen_flags: <defaults>
</compile_context>

<pallas_src>
import functools

import jax
import jax.numpy as jnp
from jax import lax
from jax.experimental import pallas as pl
from jax.experimental.pallas import tpu as pltpu

LANES = 128
SUBLANES = 8


def _round_up(x, m):
    return ((x + m - 1) // m) * m


def _loss_sums_kernel(o_ref, t_ref, part_ref, *,
                      rows_valid, block_rows, chunk_rows,
                      tiles_per_core, total_tiles,
                      has_ragged, has_phantom):
    p = pl.program_id(0)            # partial-sum slot / core ("parallel")
    t = pl.program_id(1)            # tile index within this slot ("arbitrary")
    g = p * tiles_per_core + t      # global tile index (may be a phantom tile)

    @pl.when(t == 0)
    def _init():
        part_ref[...] = jnp.zeros_like(part_ref)

    num_chunks = block_rows // chunk_rows

    def tile_partials(masked, tile_base_row):
        # Chunked streaming over the tile: bounded live ranges (no full-tile
        # f32 temporaries), three (8,128) vreg accumulators carried.
        def body(i, carry):
            acc_sq, acc_ab, acc_ex = carry
            r0 = pl.multiple_of(i * chunk_rows, chunk_rows)
            o = o_ref[pl.ds(r0, chunk_rows), :].astype(jnp.float32)
            tg = t_ref[pl.ds(r0, chunk_rows), :].astype(jnp.float32)
            d = o - tg
            sq = d * d
            ab = jnp.abs(d)
            ex = jnp.exp(o)
            if masked:
                # Row-level compare (no per-element flat index -> no int32
                # overflow risk).  Only the single ragged tile runs this path.
                row = lax.broadcasted_iota(jnp.int32, (chunk_rows, LANES), 0)
                ok = (tile_base_row + i * chunk_rows + row) < rows_valid
                zero = jnp.float32(0.0)
                sq = jnp.where(ok, sq, zero)
                ab = jnp.where(ok, ab, zero)
                ex = jnp.where(ok, ex, zero)
            # (chunk_rows,128) -> (chunk_rows//8, 8, 128); summing the leading
            # axis is plain per-vreg VPU adds (no cross-lane / XLU work).
            acc_sq = acc_sq + jnp.sum(sq.reshape(-1, SUBLANES, LANES), axis=0)
            acc_ab = acc_ab + jnp.sum(ab.reshape(-1, SUBLANES, LANES), axis=0)
            acc_ex = acc_ex + jnp.sum(ex.reshape(-1, SUBLANES, LANES), axis=0)
            return acc_sq, acc_ab, acc_ex

        z = jnp.zeros((SUBLANES, LANES), jnp.float32)
        return lax.fori_loop(0, num_chunks, body, (z, z, z))

    def accumulate(parts):
        sq, ab, ex = parts
        # Single read-modify-write of the resident (3,8,128) accumulator.
        part_ref[0] = part_ref[0] + jnp.stack([sq, ab, ex])

    if has_ragged or has_phantom:
        full_upper = total_tiles - 1 if has_ragged else total_tiles

        @pl.when(g < full_upper)
        def _full():
            accumulate(tile_partials(False, 0))

        if has_ragged:
            @pl.when(g == total_tiles - 1)
            def _ragged():
                accumulate(tile_partials(True, (total_tiles - 1) * block_rows))
        # Phantom tiles (g >= total_tiles) accumulate nothing.
    else:
        accumulate(tile_partials(False, 0))


def custom_loss(output, target, a=2.0, c=0.5, *, tile_rows=4096):
    assert output.shape == target.shape, "output/target must match"
    n_total = output.size
    o_flat = jnp.ravel(output)
    t_flat = jnp.ravel(target)

    # Pad only to the next multiple of 128 lanes (<=127 zeros) when needed so
    # the flat array reshapes to (rows, 128).  The zeros contribute exactly 0
    # to the L1/L2 sums and exp(0)=1 each to the exp sum (epilogue-corrected).
    # TODO(synk): eliminate this small pad via a 1-D BlockSpec if desired.
    lane_pad = (-n_total) % LANES
    if lane_pad:
        o_flat = jnp.pad(o_flat, (0, lane_pad))
        t_flat = jnp.pad(t_flat, (0, lane_pad))
    rows = (n_total + lane_pad) // LANES

    # Minimum sublane granularity depends on dtype packing (f32:8, bf16:16).
    itemsize = jnp.dtype(o_flat.dtype).itemsize
    sub = 8 if itemsize >= 4 else (16 if itemsize == 2 else 32)

    block_rows = min(_round_up(tile_rows, sub), _round_up(rows, sub))
    total_tiles = pl.cdiv(rows, block_rows)
    has_ragged = (rows % block_rows) != 0

    # Two partial-sum slots when there is enough work: on v7x the leading
    # "parallel" axis is sharded across the two TensorCores; on v5e/v6e it is
    # just a (cheap) serial loop of length 2.
    n_par = 2 if total_tiles >= 2 else 1
    tiles_per_core = pl.cdiv(total_tiles, n_par)
    has_phantom = (n_par * tiles_per_core) > total_tiles

    # Chunk size for the in-tile streaming loop (bounds live vreg/VMEM usage).
    chunk_rows = 64 if (block_rows % 64 == 0) else sub

    o2d = o_flat.reshape(rows, LANES)
    t2d = t_flat.reshape(rows, LANES)

    kernel = functools.partial(
        _loss_sums_kernel,
        rows_valid=rows,
        block_rows=block_rows,
        chunk_rows=chunk_rows,
        tiles_per_core=tiles_per_core,
        total_tiles=total_tiles,
        has_ragged=has_ragged,
        has_phantom=has_phantom,
    )

    def in_map(pi, ti):
        g = pi * tiles_per_core + ti
        if has_phantom:
            g = jnp.minimum(g, total_tiles - 1)   # clamp phantom tile's DMA
        return (g, 0)

    partials = pl.pallas_call(
        kernel,
        out_shape=jax.ShapeDtypeStruct((n_par, 3, SUBLANES, LANES), jnp.float32),
        grid_spec=pltpu.PrefetchScalarGridSpec(
            num_scalar_prefetch=0,
            grid=(n_par, tiles_per_core),
            in_specs=[
                pl.BlockSpec((block_rows, LANES), in_map),
                pl.BlockSpec((block_rows, LANES), in_map),
            ],
            out_specs=pl.BlockSpec((1, 3, SUBLANES, LANES),
                                   lambda pi, ti: (pi, 0, 0, 0)),
        ),
        compiler_params=pltpu.CompilerParams(
            dimension_semantics=("parallel", "arbitrary"),
            vmem_limit_bytes=32 * 1024 * 1024,
        ),
    )(o2d, t2d)

    # Tiny epilogue: cross-lane reduce of the partial slots + scalar combine.
    sums = jnp.sum(partials, axis=(0, 2, 3))
    n = jnp.float32(n_total)
    l2loss = sums[0] / n
    l1loss = sums[1] / n
    mean_exp = (sums[2] - jnp.float32(lane_pad)) / n   # remove exp(0)=1 pads
    a32 = jnp.asarray(a, jnp.float32)
    c32 = jnp.asarray(c, jnp.float32)
    shrinkage = 1.0 / (1.0 + jnp.exp(a32 * (c32 - l1loss)))
    return shrinkage * l2loss * mean_exp


def custom_loss_ref(output, target, a=2.0, c=0.5):
    o = output.astype(jnp.float32)
    t = target.astype(jnp.float32)
    l2 = jnp.mean((o - t) ** 2)
    l1 = jnp.mean(jnp.abs(o - t))
    shrinkage = 1.0 / (1.0 + jnp.exp(a * (c - l1)))
    return jnp.mean(shrinkage * l2 * jnp.exp(o))


if __name__ == "__main__":
    key = jax.random.PRNGKey(0)
    k_o, k_t = jax.random.split(key)

    # Small NCHW-shaped "regression" tensors (CustomLoss is shape-agnostic).
    shape = (2, 4, 16, 16)
    output = jax.random.normal(k_o, shape, dtype=jnp.float32) * 0.5
    target = jax.random.normal(k_t, shape, dtype=jnp.float32) * 0.5
    loss = custom_loss(output, target)
    jax.block_until_ready(loss)
    ref = custom_loss_ref(output, target)
    assert jnp.allclose(loss, ref, rtol=1e-5, atol=1e-6), (loss, ref)

    # Ragged path: n_total not a multiple of 128 (lane-pad + epilogue fix),
    # ragged last row-tile (masked branch), odd tile count (phantom tile).
    shape2 = (3, 5, 17, 23)
    o2 = jax.random.normal(k_o, shape2, dtype=jnp.float32) * 0.3
    t2 = jax.random.normal(k_t, shape2, dtype=jnp.float32) * 0.3
    loss2 = custom_loss(o2, t2, tile_rows=16)
    jax.block_until_ready(loss2)
    ref2 = custom_loss_ref(o2, t2)
    assert jnp.allclose(loss2, ref2, rtol=1e-5, atol=1e-6), (loss2, ref2)

    # Multi-tile, two parallel slots, no padding, no ragged tile.
    shape3 = (4, 8, 32, 32)
    o3 = jax.random.normal(k_o, shape3, dtype=jnp.float32) * 0.2
    t3 = jax.random.normal(k_t, shape3, dtype=jnp.float32) * 0.2
    loss3 = custom_loss(o3, t3, tile_rows=64)
    jax.block_until_ready(loss3)
    ref3 = custom_loss_ref(o3, t3)
    assert jnp.allclose(loss3, ref3, rtol=1e-5, atol=1e-6), (loss3, ref3)

    print("KERNEL_OK")
</pallas_src>

<mosaic_0001>
module attributes {stable_mosaic.version = 11 : i64} {
  func.func @_loss_sums_kernel(%arg0: i32, %arg1: i32, %arg2: memref<16x128xf32, #tpu.memory_space<vmem>>, %arg3: memref<16x128xf32, #tpu.memory_space<vmem>>, %arg4: memref<1x3x8x128xf32, #tpu.memory_space<vmem>>) attributes {dimension_semantics = [#tpu.dimension_semantics<parallel>, #tpu.dimension_semantics<arbitrary>], iteration_bounds = array<i64: 1, 1>, scalar_prefetch = 0 : i64, scratch_operands = 0 : i64, tpu.core_type = #tpu.core_type<tc>, window_params = [{transform_indices = @transform_0, window_bounds = array<i64: 16, 128>}, {transform_indices = @transform_1, window_bounds = array<i64: 16, 128>}, {transform_indices = @transform_2, window_bounds = array<i64: 1, 3, 8, 128>}]} {
    %c0_i32 = arith.constant 0 : i32
    %0 = arith.cmpi eq, %arg1, %c0_i32 : i32
    %1 = arith.extui %0 : i1 to i32
    %c0_i32_0 = arith.constant 0 : i32
    %2 = arith.cmpi ne, %1, %c0_i32_0 : i32
    scf.if %2 {
      %cst_10 = arith.constant 0.000000e+00 : f32
      %16 = vector.broadcast %cst_10 : f32 to vector<1x3x8x128xf32>
      %c0_11 = arith.constant 0 : index
      %c0_12 = arith.constant 0 : index
      %c0_13 = arith.constant 0 : index
      %c0_14 = arith.constant 0 : index
      %17 = vector.load %arg4[%c0_11, %c0_12, %c0_13, %c0_14] : memref<1x3x8x128xf32, #tpu.memory_space<vmem>>, vector<1x3x8x128xf32>
      tpu.vector_store %arg4[%c0_11, %c0_12, %c0_13, %c0_14], %16 {strides = array<i32>} : memref<1x3x8x128xf32, #tpu.memory_space<vmem>>, vector<1x3x8x128xf32>,
    } else {
    }
    %cst = arith.constant 0.000000e+00 : f32
    %3 = vector.broadcast %cst : f32 to vector<8x128xf32>
    %c0_i32_1 = arith.constant 0 : i32
    %c2_i32 = arith.constant 2 : i32
    %4 = arith.addi %c0_i32_1, %c2_i32 : i32
    %c1_i32 = arith.constant 1 : i32
    %5:3 = scf.for %arg5 = %c0_i32_1 to %4 step %c1_i32 iter_args(%arg6 = %3, %arg7 = %3, %arg8 = %3) -> (vector<8x128xf32>, vector<8x128xf32>, vector<8x128xf32>)  : i32 {
      %c8_i32 = arith.constant 8 : i32
      %16 = arith.muli %arg5, %c8_i32 : i32
      %17 = tpu.assume_multiple %16, 8 : i32
      %18 = arith.index_cast %17 : i32 to index
      %c0_10 = arith.constant 0 : index
      %19 = vector.load %arg2[%18, %c0_10] : memref<16x128xf32, #tpu.memory_space<vmem>>, vector<8x128xf32>
      %20 = arith.index_cast %17 : i32 to index
      %c0_11 = arith.constant 0 : index
      %21 = vector.load %arg3[%20, %c0_11] : memref<16x128xf32, #tpu.memory_space<vmem>>, vector<8x128xf32>
      %22 = arith.subf %19, %21 : vector<8x128xf32>
      %23 = arith.mulf %22, %22 : vector<8x128xf32>
      %24 = math.absf %22 : vector<8x128xf32>
      %25 = math.exp %19 : vector<8x128xf32>
      %26 = vector.shape_cast %23 : vector<8x128xf32> to vector<1x8x128xf32>
      %cst_12 = arith.constant dense<0.000000e+00> : vector<8x128xf32>
      %27 = vector.multi_reduction <add>, %26, %cst_12 [0] : vector<1x8x128xf32> to vector<8x128xf32>
      %28 = arith.addf %arg6, %27 : vector<8x128xf32>
      %29 = vector.shape_cast %24 : vector<8x128xf32> to vector<1x8x128xf32>
      %cst_13 = arith.constant dense<0.000000e+00> : vector<8x128xf32>
      %30 = vector.multi_reduction <add>, %29, %cst_13 [0] : vector<1x8x128xf32> to vector<8x128xf32>
      %31 = arith.addf %arg7, %30 : vector<8x128xf32>
      %32 = vector.shape_cast %25 : vector<8x128xf32> to vector<1x8x128xf32>
      %cst_14 = arith.constant dense<0.000000e+00> : vector<8x128xf32>
      %33 = vector.multi_reduction <add>, %32, %cst_14 [0] : vector<1x8x128xf32> to vector<8x128xf32>
      %34 = arith.addf %arg8, %33 : vector<8x128xf32>
      scf.yield %28, %31, %34 : vector<8x128xf32>, vector<8x128xf32>, vector<8x128xf32>
    }
    %c2_i32_2 = arith.constant 2 : i32
    %c0 = arith.constant 0 : index
    %c0_3 = arith.constant 0 : index
    %c0_4 = arith.constant 0 : index
    %c0_5 = arith.constant 0 : index
    %6 = vector.load %arg4[%c0, %c0_3, %c0_4, %c0_5] : memref<1x3x8x128xf32, #tpu.memory_space<vmem>>, vector<1x3x8x128xf32>
    %7 = vector.shape_cast %6 : vector<1x3x8x128xf32> to vector<3x8x128xf32>
    %8 = vector.shape_cast %5#0 : vector<8x128xf32> to vector<1x8x128xf32>
    %9 = vector.shape_cast %5#1 : vector<8x128xf32> to vector<1x8x128xf32>
    %10 = vector.shape_cast %5#2 : vector<8x128xf32> to vector<1x8x128xf32>
    %11 = tpu.concatenate %8, %9, %10 in 0 : vector<1x8x128xf32>, vector<1x8x128xf32>, vector<1x8x128xf32> -> vector<3x8x128xf32>
    %12 = arith.addf %7, %11 : vector<3x8x128xf32>
    %c0_6 = arith.constant 0 : index
    %c0_7 = arith.constant 0 : index
    %c0_8 = arith.constant 0 : index
    %c0_9 = arith.constant 0 : index
    %13 = vector.load %arg4[%c0_6, %c0_7, %c0_8, %c0_9] : memref<1x3x8x128xf32, #tpu.memory_space<vmem>>, vector<1x3x8x128xf32>
    %14 = vector.shape_cast %13 : vector<1x3x8x128xf32> to vector<3x8x128xf32>
    %15 = vector.shape_cast %12 : vector<3x8x128xf32> to vector<1x3x8x128xf32>
    tpu.vector_store %arg4[%c0_6, %c0_7, %c0_8, %c0_9], %15 {strides = array<i32>} : memref<1x3x8x128xf32, #tpu.memory_space<vmem>>, vector<1x3x8x128xf32>,
    return
  }
  func.func @transform_0(%arg0: i32, %arg1: i32) -> (i32, i32) {
    %c1_i32 = arith.constant 1 : i32
    %0 = arith.muli %arg0, %c1_i32 : i32
    %1 = arith.addi %0, %arg1 : i32
    %c0_i32 = arith.constant 0 : i32
    %c0_i32_0 = arith.constant 0 : i32
    return %1, %c0_i32 : i32, i32
  }
  func.func @transform_1(%arg0: i32, %arg1: i32) -> (i32, i32) {
    %c1_i32 = arith.constant 1 : i32
    %0 = arith.muli %arg0, %c1_i32 : i32
    %1 = arith.addi %0, %arg1 : i32
    %c0_i32 = arith.constant 0 : i32
    %c0_i32_0 = arith.constant 0 : i32
    return %1, %c0_i32 : i32, i32
  }
  func.func @transform_2(%arg0: i32, %arg1: i32) -> (i32, i32, i32, i32) {
    %c0_i32 = arith.constant 0 : i32
    %c0_i32_0 = arith.constant 0 : i32
    %c0_i32_1 = arith.constant 0 : i32
    %c0_i32_2 = arith.constant 0 : i32
    return %arg0, %c0_i32, %c0_i32_0, %c0_i32_1 : i32, i32, i32, i32
  }
}

</mosaic_0001>

<llo_original>
// kernel: tpu_custom_call.1
$region0: #{tpu_custom_call.1}
  #allocation0 [shape = 'u32[]', space=smem, size = 0x4, offset = 0x4, fixed_abs, tag = 'smem constant byte address 0x4 - core index']
  #allocation1 [shape = 'u32[72,128]{1,0:T(1,128)}', space=vmem, size = 0x9000, scoped, tag = 'internal scratch']
  %s0 = inlined_call_operand.hbm [shape: f32[16,128], index: 0, kind: input, shape index: {}]
  %s1 = inlined_call_operand.hbm [shape: f32[16,128], index: 1, kind: input, shape index: {}]
  %s2 = inlined_call_operand.hbm [shape: f32[1,3,8,128], index: 2, kind: output, shape index: {}]
  %s3 = sld [smem:[#allocation0]]
  $region37: #{tpu_custom_call.1} parent=0
    _
  %s5 = ssub.s32 1, %s3
  %s6 = scalar_select 0, %s5, %s3
  $region1: #{tpu_custom_call.1} parent=0
    #allocation2 [shape = 'u8[8192]{0}', space=vmem, size = 0x2000, scoped, tag = 'input window, operand 0, single buffered']
    #allocation3 [shape = 's32[1]{0}', space=sflag, size = 0x4, scoped, tag = 'scoped memory for tpu_custom_call.1']
    #allocation4 [shape = 's32[1]{0}', space=sflag, size = 0x4, scoped, tag = 'scoped memory for tpu_custom_call.1']
    #allocation5 [shape = 'u8[8192]{0}', space=vmem, size = 0x2000, scoped, tag = 'input window, operand 1, single buffered']
    #allocation6 [shape = 's32[1]{0}', space=sflag, size = 0x4, scoped, tag = 'scoped memory for tpu_custom_call.1']
    #allocation7 [shape = 'u8[12288]{0}', space=vmem, size = 0x3000, scoped, tag = 'output window, operand 0, single buffered']
    %7 = vsyncpa [#allocation3], 0
    %8 = vsyncpa [#allocation6], 0
    %9 = vsyncpa [#allocation4], 0
    // Predicated region
    $region2: #{tpu_custom_call.1} parent=1 // pred_check
      _
    $region3: #{tpu_custom_call.1} parent=1 // pred_check_branch
      %11 = sbr.rel (0) target = $region5
    $region4: #{tpu_custom_call.1} parent=1 // pred_region
      %s12 = sadd.s32 0, 0
      %s13 = smul.u32 2, %s12
      %15 = vsyncadd [#allocation3], 0
      %s16 = smul.addr %s13, 8
      %s17 = scalar_lea.hbm %s0, %s16
      %s18 = sshll.u32 %s17, 4
      %s19 = int_to_ptr.hbm [resolvable:$true] %s18
      %s20 = sshll.u32 [#allocation2], 4
      %s21 = int_to_ptr.vmem [resolvable:$true] %s20
      %26 = dma.hbm_to_vmem [thread:$0]  %s19, 256, %s21, [#allocation3], 128, 128, 8
    $region5: #{tpu_custom_call.1} parent=1 // pred_fallthru
      _
    // Predicated region
    $region6: #{tpu_custom_call.1} parent=1 // pred_check
      _
    $region7: #{tpu_custom_call.1} parent=1 // pred_check_branch
      %28 = sbr.rel (0) target = $region9
    $region8: #{tpu_custom_call.1} parent=1 // pred_region
      %s29 = sadd.s32 0, 0
      %s30 = smul.u32 2, %s29
      %32 = vsyncadd [#allocation6], 0
      %s33 = smul.addr %s30, 8
      %s34 = scalar_lea.hbm %s1, %s33
      %s35 = sshll.u32 %s34, 4
      %s36 = int_to_ptr.hbm [resolvable:$true] %s35
      %s37 = sshll.u32 [#allocation5], 4
      %s38 = int_to_ptr.vmem [resolvable:$true] %s37
      %43 = dma.hbm_to_vmem [thread:$0]  %s36, 256, %s38, [#allocation6], 128, 128, 8
    $region9: #{tpu_custom_call.1} parent=1 // pred_fallthru
      _
    // Predicated region
    $region10: #{tpu_custom_call.1} parent=1 // pred_check
      _
    $region11: #{tpu_custom_call.1} parent=1 // pred_check_branch
      %45 = sbr.rel (0) target = $region13
    $region12: #{tpu_custom_call.1} parent=1 // pred_region
      %47 = dma.done [#allocation3], 256
    $region13: #{tpu_custom_call.1} parent=1 // pred_fallthru
      _
    // Predicated region
    $region14: #{tpu_custom_call.1} parent=1 // pred_check
      _
    $region15: #{tpu_custom_call.1} parent=1 // pred_check_branch
      %49 = sbr.rel (0) target = $region17
    $region16: #{tpu_custom_call.1} parent=1 // pred_region
      %51 = dma.done [#allocation6], 256
    $region17: #{tpu_custom_call.1} parent=1 // pred_fallthru
      _
    %s52 = sadd.s32 0, 0
    %s53 = smul.u32 2, %s52
    %s54 = sadd.s32 0, 0
    %s55 = smul.u32 2, %s54
    %p56 = scmp.eq.s32.totalorder 0, 0
    // Predicated region
    $region18: #{tpu_custom_call.1} parent=1 // pred_check
      %p57 = pneg %p56
    $region19: #{tpu_custom_call.1} parent=1 // pred_check_branch
      %59 = sbr.rel (%p57) target = $region21
    $region20: #{tpu_custom_call.1} parent=1 // pred_region
      %60 = vst [vmem:[#allocation7] sm:$0xff] 0.0
      %61 = vst [vmem:[#allocation7 + $0x8] sm:$0xff] 0.0
      %62 = vst [vmem:[#allocation7 + $0x10] sm:$0xff] 0.0
    $region21: #{tpu_custom_call.1} parent=1 // pred_fallthru
      _
    loop: start=0, step=1, limit=2
    $region22: #{tpu_custom_call.1} parent=1 // loop_pre_header
      _
    $region23: #{tpu_custom_call.1} parent=1 // loop_header
      %s64 = sphi 0, %s68
      %p65 = scmp.ge.s32.totalorder %s64, 2
      %v69 = vphi 0.0, %v83
      %v70 = vphi 0.0, %v85
      %v71 = vphi 0.0, %v87
    $region24: #{tpu_custom_call.1} parent=1 // loop_header_branch
      %67 = sbr.rel (%p65) target = $region28
    $region25: #{tpu_custom_call.1} parent=1 // loop_body
      %s72 = smul.u32 %s64, 8
      %s73 = scalar_lea.vmem [#allocation2], %s72
      %v74 = vld [vmem:[%s73] sm:$0xff]
      %s75 = scalar_lea.vmem [#allocation5], %s72
      %v76 = vld [vmem:[%s75] sm:$0xff]
      %v77 = vsub.f32 %v74, %v76
      %v78 = vmul.f32 %v77, %v77
      %v79 = vand.u32 2147483647, %v77
      %v80 = vmul.f32 %v74, 1.442695
      %v81 = vpow.pop %v80
      %v82 = vadd.f32 %v78, 0.0
      %v83 = vadd.f32 %v69, %v82
      %v84 = vadd.f32 %v79, 0.0
      %v85 = vadd.f32 %v70, %v84
      %v86 = vadd.f32 %v81, 0.0
      %v87 = vadd.f32 %v71, %v86
    $region26: #{tpu_custom_call.1} parent=1 // loop_footer
      %s68 = sadd.s32 1, %s64
    $region27: #{tpu_custom_call.1} parent=1 // loop_footer_branch
      %63 = sbr.rel target = $region23
    $region28: #{tpu_custom_call.1} parent=1 // loop_exit
      _
    %v88 = vld [vmem:[#allocation7] sm:$0xff]
    %v89 = vld [vmem:[#allocation7 + $0x8] sm:$0xff]
    %v90 = vld [vmem:[#allocation7 + $0x10] sm:$0xff]
    %v91 = vadd.f32 %v88, %v69
    %v92 = vadd.f32 %v89, %v70
    %v93 = vadd.f32 %v90, %v71
    %94 = vst [vmem:[#allocation7] sm:$0xff] %v91
    %95 = vst [vmem:[#allocation7 + $0x8] sm:$0xff] %v92
    %96 = vst [vmem:[#allocation7 + $0x10] sm:$0xff] %v93
    // Predicated region
    $region29: #{tpu_custom_call.1} parent=1 // pred_check
      _
    $region30: #{tpu_custom_call.1} parent=1 // pred_check_branch
      %98 = sbr.rel (0) target = $region32
    $region31: #{tpu_custom_call.1} parent=1 // pred_region
      %100 = vsyncadd [#allocation4], 0
      %s101 = sshll.u32 [#allocation7], 4
      %s102 = int_to_ptr.vmem [resolvable:$true] %s101
      %s103 = sshll.u32 %s2, 4
      %s104 = int_to_ptr.hbm [resolvable:$true] %s103
      %109 = dma.vmem_to_hbm [thread:$0]  %s102, 384, %s104, [#allocation4], 128, 128, 8
    $region32: #{tpu_custom_call.1} parent=1 // pred_fallthru
      _
    // Predicated region
    $region33: #{tpu_custom_call.1} parent=1 // pred_check
      _
    $region34: #{tpu_custom_call.1} parent=1 // pred_check_branch
      %111 = sbr.rel (0) target = $region36
    $region35: #{tpu_custom_call.1} parent=1 // pred_region
      %113 = dma.done [#allocation4], 384
    $region36: #{tpu_custom_call.1} parent=1 // pred_fallthru
      _
    %114 = vsyncpa [#allocation3], 1
    %115 = vsyncpa [#allocation6], 1
    %116 = vsyncpa [#allocation4], 1

</llo_original>
